<compile_context>
chip_gen: v5e
topology: v5e:2x2
jax: 0.10.0
libtpu: 0.0.40
codegen_flags: <defaults>
</compile_context>

<pallas_src>
import functools

import jax
import jax.numpy as jnp
from jax.experimental import pallas as pl
from jax.experimental.pallas import tpu as pltpu


def _round_up(x: int, m: int) -> int:
    return (x + m - 1) // m * m


def _pick_tile(dim: int, cap: int, align: int) -> int:
    """Largest multiple of `align` that divides `dim` and is <= cap.

    `dim` is assumed to already be a multiple of `align`.
    """
    best = align
    t = align
    lim = min(cap, dim)
    while t <= lim:
        if dim % t == 0:
            best = t
        t += align
    return best


def _vmem_cap_bytes() -> int:
    """Generation-aware scoped-VMEM cap: ~3/4 of physical, clamped to
    [16 MiB, 48 MiB] so it is safe on v7x (64 MiB physical) and still raises
    v5e's 16 MiB scoped default."""
    try:
        phys = pltpu.get_tpu_info().vmem_capacity_bytes
    except Exception:
        phys = 64 * 1024 * 1024
    return max(16 * 1024 * 1024, min(48 * 1024 * 1024, (phys * 3) // 4))


def _gelu_f32(y):
    # tanh-approx GELU in f32; tanh routes to the EUP slot.
    c = 0.7978845608028654  # sqrt(2 / pi)
    return 0.5 * y * (1.0 + jnp.tanh(c * (y + 0.044715 * (y * y * y))))


# ----------------------------------------------------------------------------
# Per-layer tiled Linear (+ fused bias / GELU epilogue)
# ----------------------------------------------------------------------------
def _linear_kernel(x_ref, w_ref, b_ref, o_ref, acc_ref, *, apply_gelu: bool):
    """One (tm, tn) output tile of y = x @ w + b (optionally GELU'd).

    Grid: (i over M tiles, j over N tiles, k over K tiles); the output tile and
    its f32 accumulator stay resident across the K axis.
    """
    k = pl.program_id(2)

    @pl.when(k == 0)
    def _zero_acc():
        acc_ref[...] = jnp.zeros_like(acc_ref)

    # Native bf16 MXU matmul with f32 accumulation.
    acc_ref[...] += jnp.dot(
        x_ref[...], w_ref[...], preferred_element_type=jnp.float32
    )

    @pl.when(k == pl.num_programs(2) - 1)
    def _epilogue():
        y = acc_ref[...] + b_ref[...].astype(jnp.float32)  # (tm, tn) + (1, tn)
        if apply_gelu:
            y = _gelu_f32(y)
        o_ref[...] = y.astype(o_ref.dtype)  # single lane-dense store


def _linear_pallas(x, w, b, *, apply_gelu: bool, out_dtype,
                   tm_cap: int = 512, tn_cap: int = 512, tk_cap: int = 512):
    """y = x @ w + b (optional GELU).

    All operands are pre-padded / tile-aligned:
      x: (Mp, Kp) bf16, w: (Kp, Np) bf16, b: (1, Np) f32.
    """
    Mp, Kp = x.shape
    Kw, Np = w.shape
    assert Kp == Kw, (Kp, Kw)
    assert b.shape == (1, Np), b.shape
    assert Mp % 8 == 0 and Kp % 128 == 0 and Np % 128 == 0

    tm = _pick_tile(Mp, tm_cap, 8)
    tk = _pick_tile(Kp, tk_cap, 128)
    tn = _pick_tile(Np, tn_cap, 128)

    # v7x has two TensorCores: ensure a "parallel" axis has >= 2 grid points
    # whenever the shape allows.
    if Mp // tm == 1 and Np // tn == 1:
        if tn >= 256:
            tn //= 2
        elif tm >= 16 and tm % 16 == 0:
            tm //= 2

    grid = (Mp // tm, Np // tn, Kp // tk)

    xb = jnp.dtype(x.dtype).itemsize
    wb = jnp.dtype(w.dtype).itemsize
    ob = jnp.dtype(out_dtype).itemsize
    work_bytes = (2 * (tm * tk * xb + tk * tn * wb)   # double-buffered inputs
                  + 2 * tm * tn * ob                  # double-buffered output
                  + tm * tn * 4 + 2 * tn * 4)         # f32 accumulator + bias
    vmem_limit = int(min(_vmem_cap_bytes(),
                         max(2 * work_bytes, 16 * 1024 * 1024)))

    cost = pl.CostEstimate(
        flops=2 * Mp * Kp * Np,
        transcendentals=(Mp * Np if apply_gelu else 0),
        bytes_accessed=Mp * Kp * xb + Kp * Np * wb + Mp * Np * ob + Np * 4,
    )

    return pl.pallas_call(
        functools.partial(_linear_kernel, apply_gelu=apply_gelu),
        out_shape=jax.ShapeDtypeStruct((Mp, Np), out_dtype),
        grid_spec=pltpu.PrefetchScalarGridSpec(
            num_scalar_prefetch=0,
            grid=grid,
            in_specs=[
                pl.BlockSpec((tm, tk), lambda i, j, k: (i, k)),   # activations
                pl.BlockSpec((tk, tn), lambda i, j, k: (k, j)),   # weights
                pl.BlockSpec((1, tn), lambda i, j, k: (0, j)),    # bias
            ],
            out_specs=pl.BlockSpec((tm, tn), lambda i, j, k: (i, j)),
            scratch_shapes=[pltpu.VMEM((tm, tn), jnp.float32)],
        ),
        compiler_params=pltpu.CompilerParams(
            dimension_semantics=("parallel", "parallel", "arbitrary"),
            vmem_limit_bytes=vmem_limit,
        ),
        cost_estimate=cost,
    )(x, w, b)


# ----------------------------------------------------------------------------
# Fully fused MLP (single pallas_call, grid over M only)
# ----------------------------------------------------------------------------
def _fused_mlp_kernel(*refs, num_layers: int):
    """refs = (x, w0, b0, w1, b1, ..., o).  All weights resident in VMEM;
    intermediates never leave VMEM/vregs."""
    x_ref = refs[0]
    o_ref = refs[1 + 2 * num_layers]

    h = x_ref[...]  # bf16 (tm, Kp0)
    for li in range(num_layers):
        w = refs[1 + 2 * li][...]
        b = refs[2 + 2 * li][...]
        y = jnp.dot(h, w, preferred_element_type=jnp.float32)
        y = y + b.astype(jnp.float32)
        if li < num_layers - 1:
            h = _gelu_f32(y).astype(jnp.bfloat16)   # keep MXU operands bf16
        else:
            h = y
    o_ref[...] = h.astype(o_ref.dtype)


def _fused_mlp_pallas(x, weights, biases, *, out_dtype, tm_cap: int = 512):
    Mp, Kp0 = x.shape
    n = len(weights)
    Np_last = weights[-1].shape[1]

    tm = _pick_tile(Mp, tm_cap, 8)
    if Mp // tm == 1 and tm >= 16 and tm % 16 == 0:
        tm //= 2  # give v7x's second TensorCore a tile when possible

    in_specs = [pl.BlockSpec((tm, Kp0), lambda i: (i, 0))]
    operands = [x]
    flops = 0
    trans = 0
    bytes_accessed = Mp * Kp0 * 2 + Mp * Np_last * jnp.dtype(out_dtype).itemsize
    wsum_bytes = 0
    max_np = 0
    for li, (w, b) in enumerate(zip(weights, biases)):
        in_specs.append(pl.BlockSpec(w.shape, lambda i: (0, 0)))
        in_specs.append(pl.BlockSpec(b.shape, lambda i: (0, 0)))
        operands += [w, b]
        Kp, Np = w.shape
        flops += 2 * Mp * Kp * Np
        if li < n - 1:
            trans += Mp * Np
        bytes_accessed += Kp * Np * 2 + Np * 4
        wsum_bytes += 2 * (Kp * Np * 2) + Np * 4   # (double-buffered) weights + bias
        max_np = max(max_np, Np)

    work_bytes = (wsum_bytes
                  + 2 * tm * Kp0 * 2
                  + 2 * tm * Np_last * jnp.dtype(out_dtype).itemsize
                  + (n + 1) * tm * max_np * 4)     # in-kernel f32 intermediates
    vmem_limit = int(min(_vmem_cap_bytes(),
                         max(2 * work_bytes, 16 * 1024 * 1024)))

    cost = pl.CostEstimate(flops=flops, transcendentals=trans,
                           bytes_accessed=bytes_accessed)

    return pl.pallas_call(
        functools.partial(_fused_mlp_kernel, num_layers=n),
        out_shape=jax.ShapeDtypeStruct((Mp, Np_last), out_dtype),
        grid_spec=pltpu.PrefetchScalarGridSpec(
            num_scalar_prefetch=0,
            grid=(Mp // tm,),
            in_specs=in_specs,
            out_specs=pl.BlockSpec((tm, Np_last), lambda i: (i, 0)),
        ),
        compiler_params=pltpu.CompilerParams(
            dimension_semantics=("parallel",),
            vmem_limit_bytes=vmem_limit,
        ),
        cost_estimate=cost,
    )(*operands)


# ----------------------------------------------------------------------------
# Parameter prep (done ONCE) + forward
# ----------------------------------------------------------------------------
def prepare_mlp_params(weights, biases, *, param_dtype=jnp.bfloat16):
    """Pad each (d_i, d_{i+1}) weight to 128-multiples and cast to bf16; pad
    the bias to the same width (kept f32, shape (1, Np)).  Hoisted out of the
    forward path so padding/casting costs are paid once, not per call."""
    pw, pb = [], []
    for w, b in zip(weights, biases):
        K, N = w.shape
        Kp, Np = _round_up(K, 128), _round_up(N, 128)
        wp = jnp.pad(w, ((0, Kp - K), (0, Np - N))).astype(param_dtype)
        bp = jnp.pad(b, (0, Np - N)).astype(jnp.float32).reshape(1, Np)
        pw.append(wp)
        pb.append(bp)
    return pw, pb


def mlp_forward(x, padded_weights, padded_biases, *, out_features,
                allow_fused=True):
    """(Linear -> GELU)*N -> Linear.  x: (B, S, d_in) -> (B, S, out_features).

    padded_weights[i]: (Kp_i, Np_i) bf16 (already transposed vs torch Linear,
    padded to 128-multiples); padded_biases[i]: (1, Np_i) f32.
    """
    B, S, d_in = x.shape
    M = B * S
    Kp0 = padded_weights[0].shape[0]
    n = len(padded_weights)

    Mp = _round_up(M, 8)
    h = x.reshape(M, d_in)
    h = jnp.pad(h, ((0, Mp - M), (0, Kp0 - d_in)))   # only the raw input needs a K-pad
    h = h.astype(jnp.bfloat16)                        # bf16 MXU operands / HBM traffic

    # Fully fused path when all padded weights fit comfortably in VMEM:
    # intermediate activations never touch HBM, one pallas_call total.
    fused_bytes = sum(2 * w.size * w.dtype.itemsize + b.size * 4
                      for w, b in zip(padded_weights, padded_biases))
    if allow_fused and fused_bytes <= _vmem_cap_bytes() // 3:
        out = _fused_mlp_pallas(h, padded_weights, padded_biases,
                                out_dtype=x.dtype)
    else:
        for i, (w, b) in enumerate(zip(padded_weights, padded_biases)):
            last = (i == n - 1)
            # Hidden activations round-trip HBM as bf16; final layer emits f32.
            h = _linear_pallas(h, w, b, apply_gelu=not last,
                               out_dtype=(x.dtype if last else jnp.bfloat16))
        out = h

    return out[:M, :out_features].reshape(B, S, out_features)


if __name__ == "__main__":
    key = jax.random.PRNGKey(0)
    B, S = 2, 8
    in_features, hidden_dims, out_features = 16, [32, 32], 8

    dims = [in_features] + hidden_dims + [out_features]
    keys = jax.random.split(key, 2 * (len(dims) - 1) + 1)

    x = jax.random.normal(keys[0], (B, S, in_features), dtype=jnp.float32)

    weights, biases = [], []
    for li in range(len(dims) - 1):
        kw, kb = keys[1 + 2 * li], keys[2 + 2 * li]
        bound = 1.0 / (dims[li] ** 0.5)
        weights.append(jax.random.uniform(
            kw, (dims[li], dims[li + 1]), jnp.float32, -bound, bound))
        biases.append(jax.random.uniform(
            kb, (dims[li + 1],), jnp.float32, -bound, bound))

    # Parameter prep (pad + bf16 cast) happens once, outside the forward path.
    pw, pb = prepare_mlp_params(weights, biases)

    # Exercise both code paths: fully fused single-kernel MLP and the
    # per-layer tiled-matmul fallback.
    y_fused = mlp_forward(x, pw, pb, out_features=out_features, allow_fused=True)
    y_layer = mlp_forward(x, pw, pb, out_features=out_features, allow_fused=False)
    jax.block_until_ready((y_fused, y_layer))

    # Pure-JAX f32 reference (tanh-GELU to match the kernel epilogue).
    h = x.reshape(B * S, in_features)
    for i, (w, b) in enumerate(zip(weights, biases)):
        h = h @ w + b
        if i < len(weights) - 1:
            h = jax.nn.gelu(h, approximate=True)
    ref = h.reshape(B, S, out_features)

    for name, y in (("fused", y_fused), ("per-layer", y_layer)):
        max_err = float(jnp.max(jnp.abs(y - ref)))
        assert jnp.allclose(y, ref, atol=5e-2, rtol=5e-2), \
            f"{name} max_err={max_err}"

    print("KERNEL_OK")
</pallas_src>

<mosaic_0001>
module attributes {stable_mosaic.version = 11 : i64} {
  func.func @_fused_mlp_kernel(%arg0: i32, %arg1: memref<8x128xbf16, #tpu.memory_space<vmem>>, %arg2: memref<128x128xbf16, #tpu.memory_space<vmem>>, %arg3: memref<1x128xf32, #tpu.memory_space<vmem>>, %arg4: memref<128x128xbf16, #tpu.memory_space<vmem>>, %arg5: memref<1x128xf32, #tpu.memory_space<vmem>>, %arg6: memref<128x128xbf16, #tpu.memory_space<vmem>>, %arg7: memref<1x128xf32, #tpu.memory_space<vmem>>, %arg8: memref<8x128xf32, #tpu.memory_space<vmem>>) attributes {dimension_semantics = [#tpu.dimension_semantics<parallel>], iteration_bounds = array<i64: 2>, scalar_prefetch = 0 : i64, scratch_operands = 0 : i64, tpu.core_type = #tpu.core_type<tc>, window_params = [{transform_indices = @transform_0, window_bounds = array<i64: 8, 128>}, {pipeline_mode = #tpu.pipeline_mode<synchronous>, transform_indices = @transform_1, window_bounds = array<i64: 128, 128>}, {pipeline_mode = #tpu.pipeline_mode<synchronous>, transform_indices = @transform_2, window_bounds = array<i64: 1, 128>}, {pipeline_mode = #tpu.pipeline_mode<synchronous>, transform_indices = @transform_3, window_bounds = array<i64: 128, 128>}, {pipeline_mode = #tpu.pipeline_mode<synchronous>, transform_indices = @transform_4, window_bounds = array<i64: 1, 128>}, {pipeline_mode = #tpu.pipeline_mode<synchronous>, transform_indices = @transform_5, window_bounds = array<i64: 128, 128>}, {pipeline_mode = #tpu.pipeline_mode<synchronous>, transform_indices = @transform_6, window_bounds = array<i64: 1, 128>}, {transform_indices = @transform_7, window_bounds = array<i64: 8, 128>}]} {
    %c0 = arith.constant 0 : index
    %c0_0 = arith.constant 0 : index
    %0 = vector.load %arg1[%c0, %c0_0] : memref<8x128xbf16, #tpu.memory_space<vmem>>, vector<8x128xbf16>
    %c0_1 = arith.constant 0 : index
    %c0_2 = arith.constant 0 : index
    %1 = vector.load %arg2[%c0_1, %c0_2] : memref<128x128xbf16, #tpu.memory_space<vmem>>, vector<128x128xbf16>
    %c0_3 = arith.constant 0 : index
    %c0_4 = arith.constant 0 : index
    %2 = vector.load %arg3[%c0_3, %c0_4] : memref<1x128xf32, #tpu.memory_space<vmem>>, vector<1x128xf32>
    %cst = arith.constant dense<0.000000e+00> : vector<8x128xf32>
    %3 = tpu.matmul %0, %1, %cst {dimension_numbers = #tpu.dot_dimension_numbers<[1], [0], [0], [1], [0, 0, 1, 1], [], []>} : vector<8x128xbf16>, vector<128x128xbf16>, vector<8x128xf32> -> vector<8x128xf32>
    %4 = vector.broadcast %2 : vector<1x128xf32> to vector<8x128xf32>
    %5 = arith.addf %3, %4 : vector<8x128xf32>
    %cst_5 = arith.constant 5.000000e-01 : f32
    %6 = vector.broadcast %cst_5 : f32 to vector<8x128xf32>
    %7 = arith.mulf %6, %5 : vector<8x128xf32>
    %8 = arith.mulf %5, %5 : vector<8x128xf32>
    %9 = arith.mulf %8, %5 : vector<8x128xf32>
    %cst_6 = arith.constant 4.471500e-02 : f32
    %10 = vector.broadcast %cst_6 : f32 to vector<8x128xf32>
    %11 = arith.mulf %10, %9 : vector<8x128xf32>
    %12 = arith.addf %5, %11 : vector<8x128xf32>
    %cst_7 = arith.constant 0.797884583 : f32
    %13 = vector.broadcast %cst_7 : f32 to vector<8x128xf32>
    %14 = arith.mulf %13, %12 : vector<8x128xf32>
    %15 = math.tanh %14 : vector<8x128xf32>
    %cst_8 = arith.constant 1.000000e+00 : f32
    %16 = vector.broadcast %cst_8 : f32 to vector<8x128xf32>
    %17 = arith.addf %16, %15 : vector<8x128xf32>
    %18 = arith.mulf %7, %17 : vector<8x128xf32>
    %19 = arith.truncf %18 : vector<8x128xf32> to vector<8x128xbf16>
    %c0_9 = arith.constant 0 : index
    %c0_10 = arith.constant 0 : index
    %20 = vector.load %arg4[%c0_9, %c0_10] : memref<128x128xbf16, #tpu.memory_space<vmem>>, vector<128x128xbf16>
    %c0_11 = arith.constant 0 : index
    %c0_12 = arith.constant 0 : index
    %21 = vector.load %arg5[%c0_11, %c0_12] : memref<1x128xf32, #tpu.memory_space<vmem>>, vector<1x128xf32>
    %cst_13 = arith.constant dense<0.000000e+00> : vector<8x128xf32>
    %22 = tpu.matmul %19, %20, %cst_13 {dimension_numbers = #tpu.dot_dimension_numbers<[1], [0], [0], [1], [0, 0, 1, 1], [], []>} : vector<8x128xbf16>, vector<128x128xbf16>, vector<8x128xf32> -> vector<8x128xf32>
    %23 = vector.broadcast %21 : vector<1x128xf32> to vector<8x128xf32>
    %24 = arith.addf %22, %23 : vector<8x128xf32>
    %cst_14 = arith.constant 5.000000e-01 : f32
    %25 = vector.broadcast %cst_14 : f32 to vector<8x128xf32>
    %26 = arith.mulf %25, %24 : vector<8x128xf32>
    %27 = arith.mulf %24, %24 : vector<8x128xf32>
    %28 = arith.mulf %27, %24 : vector<8x128xf32>
    %cst_15 = arith.constant 4.471500e-02 : f32
    %29 = vector.broadcast %cst_15 : f32 to vector<8x128xf32>
    %30 = arith.mulf %29, %28 : vector<8x128xf32>
    %31 = arith.addf %24, %30 : vector<8x128xf32>
    %cst_16 = arith.constant 0.797884583 : f32
    %32 = vector.broadcast %cst_16 : f32 to vector<8x128xf32>
    %33 = arith.mulf %32, %31 : vector<8x128xf32>
    %34 = math.tanh %33 : vector<8x128xf32>
    %cst_17 = arith.constant 1.000000e+00 : f32
    %35 = vector.broadcast %cst_17 : f32 to vector<8x128xf32>
    %36 = arith.addf %35, %34 : vector<8x128xf32>
    %37 = arith.mulf %26, %36 : vector<8x128xf32>
    %38 = arith.truncf %37 : vector<8x128xf32> to vector<8x128xbf16>
    %c0_18 = arith.constant 0 : index
    %c0_19 = arith.constant 0 : index
    %39 = vector.load %arg6[%c0_18, %c0_19] : memref<128x128xbf16, #tpu.memory_space<vmem>>, vector<128x128xbf16>
    %c0_20 = arith.constant 0 : index
    %c0_21 = arith.constant 0 : index
    %40 = vector.load %arg7[%c0_20, %c0_21] : memref<1x128xf32, #tpu.memory_space<vmem>>, vector<1x128xf32>
    %cst_22 = arith.constant dense<0.000000e+00> : vector<8x128xf32>
    %41 = tpu.matmul %38, %39, %cst_22 {dimension_numbers = #tpu.dot_dimension_numbers<[1], [0], [0], [1], [0, 0, 1, 1], [], []>} : vector<8x128xbf16>, vector<128x128xbf16>, vector<8x128xf32> -> vector<8x128xf32>
    %42 = vector.broadcast %40 : vector<1x128xf32> to vector<8x128xf32>
    %43 = arith.addf %41, %42 : vector<8x128xf32>
    %c0_23 = arith.constant 0 : index
    %c0_24 = arith.constant 0 : index
    %44 = vector.load %arg8[%c0_23, %c0_24] : memref<8x128xf32, #tpu.memory_space<vmem>>, vector<8x128xf32>
    tpu.vector_store %arg8[%c0_23, %c0_24], %43 {strides = array<i32>} : memref<8x128xf32, #tpu.memory_space<vmem>>, vector<8x128xf32>,
    return
  }
  func.func @transform_0(%arg0: i32) -> (i32, i32) {
    %c0_i32 = arith.constant 0 : i32
    %c0_i32_0 = arith.constant 0 : i32
    return %arg0, %c0_i32 : i32, i32
  }
  func.func @transform_1(%arg0: i32) -> (i32, i32) {
    %c0_i32 = arith.constant 0 : i32
    %c0_i32_0 = arith.constant 0 : i32
    %c0_i32_1 = arith.constant 0 : i32
    return %c0_i32, %c0_i32_0 : i32, i32
  }
  func.func @transform_2(%arg0: i32) -> (i32, i32) {
    %c0_i32 = arith.constant 0 : i32
    %c0_i32_0 = arith.constant 0 : i32
    %c0_i32_1 = arith.constant 0 : i32
    return %c0_i32, %c0_i32_0 : i32, i32
  }
  func.func @transform_3(%arg0: i32) -> (i32, i32) {
    %c0_i32 = arith.constant 0 : i32
    %c0_i32_0 = arith.constant 0 : i32
    %c0_i32_1 = arith.constant 0 : i32
    return %c0_i32, %c0_i32_0 : i32, i32
  }
  func.func @transform_4(%arg0: i32) -> (i32, i32) {
    %c0_i32 = arith.constant 0 : i32
    %c0_i32_0 = arith.constant 0 : i32
    %c0_i32_1 = arith.constant 0 : i32
    return %c0_i32, %c0_i32_0 : i32, i32
  }
  func.func @transform_5(%arg0: i32) -> (i32, i32) {
    %c0_i32 = arith.constant 0 : i32
    %c0_i32_0 = arith.constant 0 : i32
    %c0_i32_1 = arith.constant 0 : i32
    return %c0_i32, %c0_i32_0 : i32, i32
  }
  func.func @transform_6(%arg0: i32) -> (i32, i32) {
    %c0_i32 = arith.constant 0 : i32
    %c0_i32_0 = arith.constant 0 : i32
    %c0_i32_1 = arith.constant 0 : i32
    return %c0_i32, %c0_i32_0 : i32, i32
  }
  func.func @transform_7(%arg0: i32) -> (i32, i32) {
    %c0_i32 = arith.constant 0 : i32
    %c0_i32_0 = arith.constant 0 : i32
    return %arg0, %c0_i32 : i32, i32
  }
}

</mosaic_0001>

<llo_original>
// kernel: tpu_custom_call.1
$region0: #{tpu_custom_call.1}
  #allocation0 [shape = 'u32[]', space=smem, size = 0x4, offset = 0x4, fixed_abs, tag = 'smem constant byte address 0x4 - core index']
  #allocation1 [shape = 'u32[72,128]{1,0:T(1,128)}', space=vmem, size = 0x9000, scoped, tag = 'internal scratch']
  %s0 = inlined_call_operand.hbm [shape: bf16[16,128], index: 0, kind: input, shape index: {}]
  %s1 = inlined_call_operand.hbm [shape: bf16[128,128], index: 1, kind: input, shape index: {}]
  %s2 = inlined_call_operand.vmem [shape: f32[1,128], index: 2, kind: input, shape index: {}]
  %s3 = inlined_call_operand.hbm [shape: bf16[128,128], index: 3, kind: input, shape index: {}]
  %s4 = inlined_call_operand.vmem [shape: f32[1,128], index: 4, kind: input, shape index: {}]
  %s5 = inlined_call_operand.hbm [shape: bf16[128,128], index: 5, kind: input, shape index: {}]
  %s6 = inlined_call_operand.vmem [shape: f32[1,128], index: 6, kind: input, shape index: {}]
  %s7 = inlined_call_operand.hbm [shape: f32[16,128], index: 7, kind: output, shape index: {}]
  %s8 = sld [smem:[#allocation0]]
  $region77: #{tpu_custom_call.1} parent=0
    _
  %s10 = ssub.s32 1, %s8
  %s11 = scalar_select 0, %s10, %s8
  $region1: #{tpu_custom_call.1} parent=0
    #allocation2 [shape = 'u8[4096]{0}', space=vmem, size = 0x1000, scoped, tag = 'input window, operand 0']
    #allocation3 [shape = 's32[2]{0}', space=sflag, size = 0x8, scoped, tag = 'scoped memory for tpu_custom_call.1']
    #allocation4 [shape = 's32[2]{0}', space=sflag, size = 0x8, scoped, tag = 'scoped memory for tpu_custom_call.1']
    #allocation5 [shape = 'u8[32768]{0}', space=vmem, size = 0x8000, scoped, tag = 'input window, operand 1, single buffered']
    #allocation6 [shape = 's32[1]{0}', space=sflag, size = 0x4, scoped, tag = 'scoped memory for tpu_custom_call.1']
    #allocation7 [shape = 'u8[32768]{0}', space=vmem, size = 0x8000, scoped, tag = 'input window, operand 3, single buffered']
    #allocation8 [shape = 'u8[32768]{0}', space=vmem, size = 0x8000, scoped, tag = 'input window, operand 5, single buffered']
    #allocation9 [shape = 's32[1]{0}', space=sflag, size = 0x4, scoped, tag = 'scoped memory for tpu_custom_call.1']
    #allocation10 [shape = 'u8[8192]{0}', space=vmem, size = 0x2000, scoped, tag = 'output window, operand 0']
    %12 = vsyncpa [#allocation3], 0
    %s13 = scalar_lea.sflag [#allocation3], 1
    %14 = vsyncpa %s13, 0
    %15 = vsyncpa [#allocation6], 0
    %16 = vsyncpa [#allocation9], 0
    %17 = vsyncpa [#allocation4], 0
    %s18 = scalar_lea.sflag [#allocation4], 1
    %19 = vsyncpa %s18, 0
    loop: start=0, step=1, limit=4
    $region2: #{tpu_custom_call.1} parent=1 // loop_pre_header
      _
    $region3: #{tpu_custom_call.1} parent=1 // loop_header
      %s21 = sphi 0, %s25
      %p22 = scmp.ge.s32.totalorder %s21, 4
      %s31 = sphi 0, %s33
      %s34 = sphi 0, %s31
      %s35 = sphi 0, %s34
      %s51 = sphi 0, %s35
      %s55 = sphi 0, %s55
      %s57 = sphi 0, %s55
      %s58 = sphi 0, %s57
      %s72 = sphi 0, %s58
      %s76 = sphi 0, %s76
      %s78 = sphi 0, %s76
      %s79 = sphi 0, %s78
      %s93 = sphi 0, %s79
      %s97 = sphi 0, %s97
      %s99 = sphi 0, %s97
      %s100 = sphi 0, %s99
      %s114 = sphi 0, %s100
      %s118 = sphi 0, %s118
      %s120 = sphi 0, %s118
      %s121 = sphi 0, %s120
      %s135 = sphi 0, %s121
      %s139 = sphi 0, %s139
      %s141 = sphi 0, %s139
      %s142 = sphi 0, %s141
      %s156 = sphi 0, %s142
      %s160 = sphi 0, %s160
      %s162 = sphi 0, %s160
      %s163 = sphi 0, %s162
      %s177 = sphi 0, %s163
      %s183 = sphi 0, %s185
      %s186 = sphi 0, %s183
      %s187 = sphi 0, %s186
      %s203 = sphi 0, %s187
    $region4: #{tpu_custom_call.1} parent=1 // loop_header_branch
      %24 = sbr.rel (%p22) target = $region8
    $region5: #{tpu_custom_call.1} parent=1 // loop_body
      %s26 = ssub.s32 %s21, 1
      %s27 = ssub.s32 %s21, 2
      %s28 = sadd.s32 %s21, 1
      %s29 = ssub.s32 %s21, %s28
      %p30 = scmp.eq.s32.totalorder %s29, 0
      %s32 = sadd.s32 %s31, 1
      %s33 = scalar_select %p30, %s31, %s32
      %p36 = pneg %p30
      %p37 = scmp.eq.s32.totalorder %s21, 1
      %p38 = por %p36, %p37
      %p39 = scmp.ne.s32.totalorder %s31, %s34
      %p40 = scmp.eq.s32.totalorder %s21, 0
      %p41 = por %p39, %p40
      %p42 = scmp.ne.s32.totalorder %s31, %s34
      %p43 = scmp.eq.s32.totalorder %s26, 1
      %p44 = por %p42, %p43
      %p45 = scmp.ne.s32.totalorder %s34, %s35
      %p46 = scmp.eq.s32.totalorder %s26, 0
      %p47 = por %p45, %p46
      %p48 = scmp.ne.s32.totalorder %s34, %s35
      %p49 = scmp.eq.s32.totalorder %s27, 1
      %p50 = por %p48, %p49
      %p52 = scmp.ne.s32.totalorder %s35, %s51
      %p53 = scmp.eq.s32.totalorder %s27, 0
      %p54 = por %p52, %p53
      %s56 = sadd.s32 %s55, 1
      %p59 = scmp.eq.s32.totalorder %s21, 1
      %p60 = scmp.ne.s32.totalorder %s55, %s57
      %p61 = scmp.eq.s32.totalorder %s21, 0
      %p62 = por %p60, %p61
      %p63 = scmp.ne.s32.totalorder %s55, %s57
      %p64 = scmp.eq.s32.totalorder %s26, 1
      %p65 = por %p63, %p64
      %p66 = scmp.ne.s32.totalorder %s57, %s58
      %p67 = scmp.eq.s32.totalorder %s26, 0
      %p68 = por %p66, %p67
      %p69 = scmp.ne.s32.totalorder %s57, %s58
      %p70 = scmp.eq.s32.totalorder %s27, 1
      %p71 = por %p69, %p70
      %p73 = scmp.ne.s32.totalorder %s58, %s72
      %p74 = scmp.eq.s32.totalorder %s27, 0
      %p75 = por %p73, %p74
      %s77 = sadd.s32 %s76, 1
      %p80 = scmp.eq.s32.totalorder %s21, 1
      %p81 = scmp.ne.s32.totalorder %s76, %s78
      %p82 = scmp.eq.s32.totalorder %s21, 0
      %p83 = por %p81, %p82
      %p84 = scmp.ne.s32.totalorder %s76, %s78
      %p85 = scmp.eq.s32.totalorder %s26, 1
      %p86 = por %p84, %p85
      %p87 = scmp.ne.s32.totalorder %s78, %s79
      %p88 = scmp.eq.s32.totalorder %s26, 0
      %p89 = por %p87, %p88
      %p90 = scmp.ne.s32.totalorder %s78, %s79
      %p91 = scmp.eq.s32.totalorder %s27, 1
      %p92 = por %p90, %p91
      %p94 = scmp.ne.s32.totalorder %s79, %s93
      %p95 = scmp.eq.s32.totalorder %s27, 0
      %p96 = por %p94, %p95
      %s98 = sadd.s32 %s97, 1
      %p101 = scmp.eq.s32.totalorder %s21, 1
      %p102 = scmp.ne.s32.totalorder %s97, %s99
      %p103 = scmp.eq.s32.totalorder %s21, 0
      %p104 = por %p102, %p103
      %p105 = scmp.ne.s32.totalorder %s97, %s99
      %p106 = scmp.eq.s32.totalorder %s26, 1
      %p107 = por %p105, %p106
      %p108 = scmp.ne.s32.totalorder %s99, %s100
      %p109 = scmp.eq.s32.totalorder %s26, 0
      %p110 = por %p108, %p109
      %p111 = scmp.ne.s32.totalorder %s99, %s100
      %p112 = scmp.eq.s32.totalorder %s27, 1
      %p113 = por %p111, %p112
      %p115 = scmp.ne.s32.totalorder %s100, %s114
      %p116 = scmp.eq.s32.totalorder %s27, 0
      %p117 = por %p115, %p116
      %s119 = sadd.s32 %s118, 1
      %p122 = scmp.eq.s32.totalorder %s21, 1
      %p123 = scmp.ne.s32.totalorder %s118, %s120
      %p124 = scmp.eq.s32.totalorder %s21, 0
      %p125 = por %p123, %p124
      %p126 = scmp.ne.s32.totalorder %s118, %s120
      %p127 = scmp.eq.s32.totalorder %s26, 1
      %p128 = por %p126, %p127
      %p129 = scmp.ne.s32.totalorder %s120, %s121
      %p130 = scmp.eq.s32.totalorder %s26, 0
      %p131 = por %p129, %p130
      %p132 = scmp.ne.s32.totalorder %s120, %s121
      %p133 = scmp.eq.s32.totalorder %s27, 1
      %p134 = por %p132, %p133
      %p136 = scmp.ne.s32.totalorder %s121, %s135
      %p137 = scmp.eq.s32.totalorder %s27, 0
      %p138 = por %p136, %p137
      %s140 = sadd.s32 %s139, 1
      %p143 = scmp.eq.s32.totalorder %s21, 1
      %p144 = scmp.ne.s32.totalorder %s139, %s141
      %p145 = scmp.eq.s32.totalorder %s21, 0
      %p146 = por %p144, %p145
      %p147 = scmp.ne.s32.totalorder %s139, %s141
      %p148 = scmp.eq.s32.totalorder %s26, 1
      %p149 = por %p147, %p148
      %p150 = scmp.ne.s32.totalorder %s141, %s142
      %p151 = scmp.eq.s32.totalorder %s26, 0
      %p152 = por %p150, %p151
      %p153 = scmp.ne.s32.totalorder %s141, %s142
      %p154 = scmp.eq.s32.totalorder %s27, 1
      %p155 = por %p153, %p154
      %p157 = scmp.ne.s32.totalorder %s142, %s156
      %p158 = scmp.eq.s32.totalorder %s27, 0
      %p159 = por %p157, %p158
      %s161 = sadd.s32 %s160, 1
      %p164 = scmp.eq.s32.totalorder %s21, 1
      %p165 = scmp.ne.s32.totalorder %s160, %s162
      %p166 = scmp.eq.s32.totalorder %s21, 0
      %p167 = por %p165, %p166
      %p168 = scmp.ne.s32.totalorder %s160, %s162
      %p169 = scmp.eq.s32.totalorder %s26, 1
      %p170 = por %p168, %p169
      %p171 = scmp.ne.s32.totalorder %s162, %s163
      %p172 = scmp.eq.s32.totalorder %s26, 0
      %p173 = por %p171, %p172
      %p174 = scmp.ne.s32.totalorder %s162, %s163
      %p175 = scmp.eq.s32.totalorder %s27, 1
      %p176 = por %p174, %p175
      %p178 = scmp.ne.s32.totalorder %s163, %s177
      %p179 = scmp.eq.s32.totalorder %s27, 0
      %p180 = por %p178, %p179
      %s181 = ssub.s32 %s21, %s28
      %p182 = scmp.eq.s32.totalorder %s181, 0
      %s184 = sadd.s32 %s183, 1
      %s185 = scalar_select %p182, %s183, %s184
      %p188 = pneg %p182
      %p189 = scmp.eq.s32.totalorder %s21, 1
      %p190 = por %p188, %p189
      %p191 = scmp.ne.s32.totalorder %s183, %s186
      %p192 = scmp.eq.s32.totalorder %s21, 0
      %p193 = por %p191, %p192
      %p194 = scmp.ne.s32.totalorder %s183, %s186
      %p195 = scmp.eq.s32.totalorder %s26, 1
      %p196 = por %p194, %p195
      %p197 = scmp.ne.s32.totalorder %s186, %s187
      %p198 = scmp.eq.s32.totalorder %s26, 0
      %p199 = por %p197, %p198
      %p200 = scmp.ne.s32.totalorder %s186, %s187
      %p201 = scmp.eq.s32.totalorder %s27, 1
      %p202 = por %p200, %p201
      %p204 = scmp.ne.s32.totalorder %s187, %s203
      %p205 = scmp.eq.s32.totalorder %s27, 0
      %p206 = por %p204, %p205
      %p207 = scmp.le.s32.totalorder 1, %s21
      %p208 = scmp.lt.s32.totalorder %s21, 3
      %p209 = pnand %p207, %p208
      %p210 = pneg %p209
      // Predicated region
      $region9: #{tpu_custom_call.1} parent=5 // pred_check
        _
      $region10: #{tpu_custom_call.1} parent=5 // pred_check_branch
        %212 = sbr.rel (%p209) target = $region12
      $region11: #{tpu_custom_call.1} parent=5 // pred_region
        %s213 = ssub.s32 %s21, 1
        // Predicated region
        $region13: #{tpu_custom_call.1} parent=11 // pred_check
          %p214 = pneg %p68
        $region14: #{tpu_custom_call.1} parent=11 // pred_check_branch
          %216 = sbr.rel (%p214) target = $region16
        $region15: #{tpu_custom_call.1} parent=11 // pred_region
          %218 = vsyncadd [#allocation6], 0
          %s219 = sshll.u32 %s1, 4
          %s220 = int_to_ptr.hbm [resolvable:$true] %s219
          %s221 = sshll.u32 [#allocation5], 4
          %s222 = int_to_ptr.vmem [resolvable:$true] %s221
          %227 = dma.hbm_to_vmem [thread:$0]  %s220, 1024, %s222, [#allocation6], 64, 64, 4
        $region16: #{tpu_custom_call.1} parent=11 // pred_fallthru
          _
        // Predicated region
        $region17: #{tpu_custom_call.1} parent=11 // pred_check
          %p228 = pneg %p89
        $region18: #{tpu_custom_call.1} parent=11 // pred_check_branch
          %230 = sbr.rel (%p228) target = $region20
        $region19: #{tpu_custom_call.1} parent=11 // pred_region
          _
        $region20: #{tpu_custom_call.1} parent=11 // pred_fallthru
          _
        // Predicated region
        $region21: #{tpu_custom_call.1} parent=11 // pred_check
          %p231 = pneg %p110
        $region22: #{tpu_custom_call.1} parent=11 // pred_check_branch
          %233 = sbr.rel (%p231) target = $region24
        $region23: #{tpu_custom_call.1} parent=11 // pred_region
          %235 = vsyncadd [#allocation6], 0
          %s236 = sshll.u32 %s3, 4
          %s237 = int_to_ptr.hbm [resolvable:$true] %s236
          %s238 = sshll.u32 [#allocation7], 4
          %s239 = int_to_ptr.vmem [resolvable:$true] %s238
          %244 = dma.hbm_to_vmem [thread:$0]  %s237, 1024, %s239, [#allocation6], 64, 64, 4
        $region24: #{tpu_custom_call.1} parent=11 // pred_fallthru
          _
        // Predicated region
        $region25: #{tpu_custom_call.1} parent=11 // pred_check
          %p245 = pneg %p131
        $region26: #{tpu_custom_call.1} parent=11 // pred_check_branch
          %247 = sbr.rel (%p245) target = $region28
        $region27: #{tpu_custom_call.1} parent=11 // pred_region
          _
        $region28: #{tpu_custom_call.1} parent=11 // pred_fallthru
          _
        // Predicated region
        $region29: #{tpu_custom_call.1} parent=11 // pred_check
          %p248 = pneg %p152
        $region30: #{tpu_custom_call.1} parent=11 // pred_check_branch
          %250 = sbr.rel (%p248) target = $region32
        $region31: #{tpu_custom_call.1} parent=11 // pred_region
          %252 = vsyncadd [#allocation9], 0
          %s253 = sshll.u32 %s5, 4
          %s254 = int_to_ptr.hbm [resolvable:$true] %s253
          %s255 = sshll.u32 [#allocation8], 4
          %s256 = int_to_ptr.vmem [resolvable:$true] %s255
          %261 = dma.hbm_to_vmem [thread:$0]  %s254, 1024, %s256, [#allocation9], 64, 64, 4
        $region32: #{tpu_custom_call.1} parent=11 // pred_fallthru
          _
        // Predicated region
        $region33: #{tpu_custom_call.1} parent=11 // pred_check
          %p262 = pneg %p173
        $region34: #{tpu_custom_call.1} parent=11 // pred_check_branch
          %264 = sbr.rel (%p262) target = $region36
        $region35: #{tpu_custom_call.1} parent=11 // pred_region
          _
        $region36: #{tpu_custom_call.1} parent=11 // pred_fallthru
          _
      $region12: #{tpu_custom_call.1} parent=5 // pred_fallthru
        _
      %p265 = scmp.lt.s32.totalorder %s21, 2
      // Predicated region
      $region37: #{tpu_custom_call.1} parent=5 // pred_check
        %p266 = pneg %p265
      $region38: #{tpu_custom_call.1} parent=5 // pred_check_branch
        %268 = sbr.rel (%p266) target = $region40
      $region39: #{tpu_custom_call.1} parent=5 // pred_region
        // Predicated region
        $region41: #{tpu_custom_call.1} parent=39 // pred_check
          %p269 = pneg %p41
        $region42: #{tpu_custom_call.1} parent=39 // pred_check_branch
          %271 = sbr.rel (%p269) target = $region44
        $region43: #{tpu_custom_call.1} parent=39 // pred_region
          %s272 = sand.u32 %s31, 1
          %s273 = scalar_lea.sflag [#allocation3], %s272
          %s274 = sand.u32 %s31, 1
          %s275 = smul.addr %s274, 4
          %s276 = scalar_lea.vmem [#allocation2], %s275
          %278 = vsyncadd %s273, 0
          %s279 = smul.addr %s21, 4
          %s280 = scalar_lea.hbm %s0, %s279
          %s282 = sshll.u32 %s280, 4
          %s283 = int_to_ptr.hbm [resolvable:$true] %s282
          %s284 = sshll.u32 %s276, 4
          %s285 = int_to_ptr.vmem [resolvable:$true] %s284
          %287 = dma.hbm_to_vmem [thread:$0]  %s283, 64, %s285, %s273
        $region44: #{tpu_custom_call.1} parent=39 // pred_fallthru
          _
      $region40: #{tpu_custom_call.1} parent=5 // pred_fallthru
        _
      %p288 = scmp.le.s32.totalorder 1, %s21
      %p289 = scmp.lt.s32.totalorder %s21, 3
      %p290 = pnand %p288, %p289
      %p291 = pneg %p290
      // Predicated region
      $region45: #{tpu_custom_call.1} parent=5 // pred_check
        _
      $region46: #{tpu_custom_call.1} parent=5 // pred_check_branch
        %293 = sbr.rel (%p290) target = $region48
      $region47: #{tpu_custom_call.1} parent=5 // pred_region
        %s294 = ssub.s32 %s21, 1
        %s295 = sand.u32 %s34, 1
        %s296 = scalar_lea.sflag [#allocation3], %s295
        %s297 = sand.u32 %s34, 1
        %s298 = smul.addr %s297, 4
        %s299 = scalar_lea.vmem [#allocation2], %s298
        // Predicated region
        $region49: #{tpu_custom_call.1} parent=47 // pred_check
          %p300 = pneg %p47
        $region50: #{tpu_custom_call.1} parent=47 // pred_check_branch
          %302 = sbr.rel (%p300) target = $region52
        $region51: #{tpu_custom_call.1} parent=47 // pred_region
          %304 = dma.done %s296, 64
        $region52: #{tpu_custom_call.1} parent=47 // pred_fallthru
          _
        // Predicated region
        $region53: #{tpu_custom_call.1} parent=47 // pred_check
          %p305 = pneg %p68
        $region54: #{tpu_custom_call.1} parent=47 // pred_check_branch
          %307 = sbr.rel (%p305) target = $region56
        $region55: #{tpu_custom_call.1} parent=47 // pred_region
          %309 = dma.done [#allocation6], 1024
        $region56: #{tpu_custom_call.1} parent=47 // pred_fallthru
          _
        // Predicated region
        $region57: #{tpu_custom_call.1} parent=47 // pred_check
          %p310 = pneg %p110
        $region58: #{tpu_custom_call.1} parent=47 // pred_check_branch
          %312 = sbr.rel (%p310) target = $region60
        $region59: #{tpu_custom_call.1} parent=47 // pred_region
          %314 = dma.done [#allocation6], 1024
        $region60: #{tpu_custom_call.1} parent=47 // pred_fallthru
          _
        // Predicated region
        $region61: #{tpu_custom_call.1} parent=47 // pred_check
          %p315 = pneg %p152
        $region62: #{tpu_custom_call.1} parent=47 // pred_check_branch
          %317 = sbr.rel (%p315) target = $region64
        $region63: #{tpu_custom_call.1} parent=47 // pred_region
          %319 = dma.done [#allocation9], 1024
        $region64: #{tpu_custom_call.1} parent=47 // pred_fallthru
          _
        %s320 = sand.u32 %s34, 1
        %s321 = scalar_lea.sflag [#allocation3], %s320
        %s322 = sand.u32 %s34, 1
        %s323 = smul.addr %s322, 4
        %s324 = scalar_lea.vmem [#allocation2], %s323
        %p325 = pneg %p47
        %p326 = pneg %p44
        %p327 = pneg %p68
        %p328 = pneg %p65
        %p329 = pneg %p89
        %p330 = pneg %p86
        %p331 = pneg %p110
        %p332 = pneg %p107
        %p333 = pneg %p131
        %p334 = pneg %p128
        %p335 = pneg %p152
        %p336 = pneg %p149
        %p337 = pneg %p173
        %p338 = pneg %p170
        %p339 = pneg %p199
        %p340 = pneg %p196
        %s341 = sand.u32 %s186, 1
        %s342 = scalar_lea.sflag [#allocation4], %s341
        %s343 = sand.u32 %s186, 1
        %s344 = smul.addr %s343, 8
        %s345 = scalar_lea.vmem [#allocation10], %s344
        %v346 = vld [vmem:[%s299] sm:$0xf]
        %v347 = vld [vmem:[#allocation5] sm:$0xf]
        %v348 = vld [vmem:[#allocation5 + $0x4] sm:$0xf]
        %v349 = vld [vmem:[#allocation5 + $0x8] sm:$0xf]
        %v350 = vld [vmem:[#allocation5 + $0xc] sm:$0xf]
        %v351 = vld [vmem:[#allocation5 + $0x10] sm:$0xf]
        %v352 = vld [vmem:[#allocation5 + $0x14] sm:$0xf]
        %v353 = vld [vmem:[#allocation5 + $0x18] sm:$0xf]
        %v354 = vld [vmem:[#allocation5 + $0x1c] sm:$0xf]
        %v355 = vld [vmem:[#allocation5 + $0x20] sm:$0xf]
        %v356 = vld [vmem:[#allocation5 + $0x24] sm:$0xf]
        %v357 = vld [vmem:[#allocation5 + $0x28] sm:$0xf]
        %v358 = vld [vmem:[#allocation5 + $0x2c] sm:$0xf]
        %v359 = vld [vmem:[#allocation5 + $0x30] sm:$0xf]
        %v360 = vld [vmem:[#allocation5 + $0x34] sm:$0xf]
        %v361 = vld [vmem:[#allocation5 + $0x38] sm:$0xf]
        %v362 = vld [vmem:[#allocation5 + $0x3c] sm:$0xf]
        %v363 = vld [vmem:[%s2] sm:$0x1]
        %v365 = vperm.slane %v363, 0
        %v383 = vunpack.c.l.b16 %v347
        %v384 = vunpack.c.l.b16 %v348
        %v385 = vunpack.c.l.b16 %v349
        %v386 = vunpack.c.l.b16 %v350
        %v387 = vunpack.c.l.b16 %v351
        %v388 = vunpack.c.l.b16 %v352
        %v389 = vunpack.c.l.b16 %v353
        %v390 = vunpack.c.l.b16 %v354
        %v391 = vunpack.c.l.b16 %v355
        %v392 = vunpack.c.l.b16 %v356
        %v393 = vunpack.c.l.b16 %v357
        %v394 = vunpack.c.l.b16 %v358
        %v395 = vunpack.c.l.b16 %v359
        %v396 = vunpack.c.l.b16 %v360
        %v397 = vunpack.c.l.b16 %v361
        %v398 = vunpack.c.l.b16 %v362
        %v399 = vpack.c.b16 %v384, %v383
        %v400 = vpack.c.b16 %v386, %v385
        %v401 = vpack.c.b16 %v388, %v387
        %v402 = vpack.c.b16 %v390, %v389
        %v403 = vpack.c.b16 %v392, %v391
        %v404 = vpack.c.b16 %v394, %v393
        %v405 = vpack.c.b16 %v396, %v395
        %v406 = vpack.c.b16 %v398, %v397
        %415 = vmatpush.bf16.msra.mxu0 %v406
        %416 = vmatpush.bf16.msra.mxu0 %v405
        %417 = vmatpush.bf16.msra.mxu0 %v404
        %418 = vmatpush.bf16.msra.mxu0 %v403
        %419 = vmatpush.bf16.msra.mxu0 %v402
        %420 = vmatpush.bf16.msra.mxu0 %v401
        %421 = vmatpush.bf16.msra.mxu0 %v400
        %422 = vmatpush.bf16.msra.mxu0 %v399
        %423 = vmatmul.bf16.gmra.mxu0 %v346
        %v424 = vpop.f32.mrf.mxu0
        %v425 = vadd.f32 %v365, %v424
        %v426 = vpop.f32.mrf.mxu0
        %427 = vdwg.mxu0
        %v428 = vmul.f32 %v425, 0.5
        %v429 = vmul.f32 %v425, %v425
        %v430 = vmul.f32 %v429, %v425
        %v431 = vmul.f32 %v430, 0.044715
        %v432 = vadd.f32 %v425, %v431
        %v433 = vmul.f32 %v432, 0.7978846
        %v434 = vtanh.pop %v433
        %v435 = vadd.f32 %v434, 1.0
        %v436 = vmul.f32 %v428, %v435
        %v437 = vpack.c.bf16 %v436, %v436
        %v438 = vld [vmem:[#allocation7] sm:$0xf]
        %v439 = vld [vmem:[#allocation7 + $0x4] sm:$0xf]
        %v440 = vld [vmem:[#allocation7 + $0x8] sm:$0xf]
        %v441 = vld [vmem:[#allocation7 + $0xc] sm:$0xf]
        %v442 = vld [vmem:[#allocation7 + $0x10] sm:$0xf]
        %v443 = vld [vmem:[#allocation7 + $0x14] sm:$0xf]
        %v444 = vld [vmem:[#allocation7 + $0x18] sm:$0xf]
        %v445 = vld [vmem:[#allocation7 + $0x1c] sm:$0xf]
        %v446 = vld [vmem:[#allocation7 + $0x20] sm:$0xf]
        %v447 = vld [vmem:[#allocation7 + $0x24] sm:$0xf]
        %v448 = vld [vmem:[#allocation7 + $0x28] sm:$0xf]
        %v449 = vld [vmem:[#allocation7 + $0x2c] sm:$0xf]
        %v450 = vld [vmem:[#allocation7 + $0x30] sm:$0xf]
        %v451 = vld [vmem:[#allocation7 + $0x34] sm:$0xf]
        %v452 = vld [vmem:[#allocation7 + $0x38] sm:$0xf]
        %v453 = vld [vmem:[#allocation7 + $0x3c] sm:$0xf]
        %v454 = vld [vmem:[%s4] sm:$0x1]
        %v456 = vperm.slane %v454, 0
        %v474 = vunpack.c.l.b16 %v438
        %v475 = vunpack.c.l.b16 %v439
        %v476 = vunpack.c.l.b16 %v440
        %v477 = vunpack.c.l.b16 %v441
        %v478 = vunpack.c.l.b16 %v442
        %v479 = vunpack.c.l.b16 %v443
        %v480 = vunpack.c.l.b16 %v444
        %v481 = vunpack.c.l.b16 %v445
        %v482 = vunpack.c.l.b16 %v446
        %v483 = vunpack.c.l.b16 %v447
        %v484 = vunpack.c.l.b16 %v448
        %v485 = vunpack.c.l.b16 %v449
        %v486 = vunpack.c.l.b16 %v450
        %v487 = vunpack.c.l.b16 %v451
        %v488 = vunpack.c.l.b16 %v452
        %v489 = vunpack.c.l.b16 %v453
        %v490 = vpack.c.b16 %v475, %v474
        %v491 = vpack.c.b16 %v477, %v476
        %v492 = vpack.c.b16 %v479, %v478
        %v493 = vpack.c.b16 %v481, %v480
        %v494 = vpack.c.b16 %v483, %v482
        %v495 = vpack.c.b16 %v485, %v484
        %v496 = vpack.c.b16 %v487, %v486
        %v497 = vpack.c.b16 %v489, %v488
        %506 = vmatpush.bf16.msra.mxu0 %v497
        %507 = vmatpush.bf16.msra.mxu0 %v496
        %508 = vmatpush.bf16.msra.mxu0 %v495
        %509 = vmatpush.bf16.msra.mxu0 %v494
        %510 = vmatpush.bf16.msra.mxu0 %v493
        %511 = vmatpush.bf16.msra.mxu0 %v492
        %512 = vmatpush.bf16.msra.mxu0 %v491
        %513 = vmatpush.bf16.msra.mxu0 %v490
        %514 = vmatmul.bf16.gmra.mxu0 %v437
        %v515 = vpop.f32.mrf.mxu0
        %v516 = vadd.f32 %v456, %v515
        %v517 = vpop.f32.mrf.mxu0
        %518 = vdwg.mxu0
        %v519 = vmul.f32 %v516, 0.5
        %v520 = vmul.f32 %v516, %v516
        %v521 = vmul.f32 %v520, %v516
        %v522 = vmul.f32 %v521, 0.044715
        %v523 = vadd.f32 %v516, %v522
        %v524 = vmul.f32 %v523, 0.7978846
        %v525 = vtanh.pop %v524
        %v526 = vadd.f32 %v525, 1.0
        %v527 = vmul.f32 %v519, %v526
        %v528 = vpack.c.bf16 %v527, %v527
        %v529 = vld [vmem:[#allocation8] sm:$0xf]
        %v530 = vld [vmem:[#allocation8 + $0x4] sm:$0xf]
        %v531 = vld [vmem:[#allocation8 + $0x8] sm:$0xf]
        %v532 = vld [vmem:[#allocation8 + $0xc] sm:$0xf]
        %v533 = vld [vmem:[#allocation8 + $0x10] sm:$0xf]
        %v534 = vld [vmem:[#allocation8 + $0x14] sm:$0xf]
        %v535 = vld [vmem:[#allocation8 + $0x18] sm:$0xf]
        %v536 = vld [vmem:[#allocation8 + $0x1c] sm:$0xf]
        %v537 = vld [vmem:[#allocation8 + $0x20] sm:$0xf]
        %v538 = vld [vmem:[#allocation8 + $0x24] sm:$0xf]
        %v539 = vld [vmem:[#allocation8 + $0x28] sm:$0xf]
        %v540 = vld [vmem:[#allocation8 + $0x2c] sm:$0xf]
        %v541 = vld [vmem:[#allocation8 + $0x30] sm:$0xf]
        %v542 = vld [vmem:[#allocation8 + $0x34] sm:$0xf]
        %v543 = vld [vmem:[#allocation8 + $0x38] sm:$0xf]
        %v544 = vld [vmem:[#allocation8 + $0x3c] sm:$0xf]
        %v545 = vld [vmem:[%s6] sm:$0x1]
        %v547 = vperm.slane %v545, 0
        %v565 = vunpack.c.l.b16 %v529
        %v566 = vunpack.c.l.b16 %v530
        %v567 = vunpack.c.l.b16 %v531
        %v568 = vunpack.c.l.b16 %v532
        %v569 = vunpack.c.l.b16 %v533
        %v570 = vunpack.c.l.b16 %v534
        %v571 = vunpack.c.l.b16 %v535
        %v572 = vunpack.c.l.b16 %v536
        %v573 = vunpack.c.l.b16 %v537
        %v574 = vunpack.c.l.b16 %v538
        %v575 = vunpack.c.l.b16 %v539
        %v576 = vunpack.c.l.b16 %v540
        %v577 = vunpack.c.l.b16 %v541
        %v578 = vunpack.c.l.b16 %v542
        %v579 = vunpack.c.l.b16 %v543
        %v580 = vunpack.c.l.b16 %v544
        %v581 = vpack.c.b16 %v566, %v565
        %v582 = vpack.c.b16 %v568, %v567
        %v583 = vpack.c.b16 %v570, %v569
        %v584 = vpack.c.b16 %v572, %v571
        %v585 = vpack.c.b16 %v574, %v573
        %v586 = vpack.c.b16 %v576, %v575
        %v587 = vpack.c.b16 %v578, %v577
        %v588 = vpack.c.b16 %v580, %v579
        %597 = vmatpush.bf16.msra.mxu0 %v588
        %598 = vmatpush.bf16.msra.mxu0 %v587
        %599 = vmatpush.bf16.msra.mxu0 %v586
        %600 = vmatpush.bf16.msra.mxu0 %v585
        %601 = vmatpush.bf16.msra.mxu0 %v584
        %602 = vmatpush.bf16.msra.mxu0 %v583
        %603 = vmatpush.bf16.msra.mxu0 %v582
        %604 = vmatpush.bf16.msra.mxu0 %v581
        %605 = vmatmul.bf16.gmra.mxu0 %v528
        %v606 = vpop.f32.mrf.mxu0
        %v607 = vadd.f32 %v547, %v606
        %v608 = vpop.f32.mrf.mxu0
        %609 = vdwg.mxu0
        %610 = vst [vmem:[%s345] sm:$0xff] %v607
        %s611 = sand.u32 %s186, 1
        %s612 = scalar_lea.sflag [#allocation4], %s611
        %s613 = sand.u32 %s186, 1
        %s614 = smul.addr %s613, 8
        %s615 = scalar_lea.vmem [#allocation10], %s614
        // Predicated region
        $region65: #{tpu_custom_call.1} parent=47 // pred_check
          %p616 = pneg %p196
        $region66: #{tpu_custom_call.1} parent=47 // pred_check_branch
          %618 = sbr.rel (%p616) target = $region68
        $region67: #{tpu_custom_call.1} parent=47 // pred_region
          %620 = vsyncadd %s612, 0
          %s621 = smul.addr %s26, 8
          %s622 = scalar_lea.hbm %s7, %s621
          %s624 = sshll.u32 %s615, 4
          %s625 = int_to_ptr.vmem [resolvable:$true] %s624
          %s626 = sshll.u32 %s622, 4
          %s627 = int_to_ptr.hbm [resolvable:$true] %s626
          %629 = dma.vmem_to_hbm [thread:$0]  %s625, 128, %s627, %s612
        $region68: #{tpu_custom_call.1} parent=47 // pred_fallthru
          _
      $region48: #{tpu_custom_call.1} parent=5 // pred_fallthru
        _
      %p630 = scmp.le.s32.totalorder 2, %s21
      // Predicated region
      $region69: #{tpu_custom_call.1} parent=5 // pred_check
        %p631 = pneg %p630
      $region70: #{tpu_custom_call.1} parent=5 // pred_check_branch
        %633 = sbr.rel (%p631) target = $region72
      $region71: #{tpu_custom_call.1} parent=5 // pred_region
        %s634 = ssub.s32 %s21, 2
        // Predicated region
        $region73: #{tpu_custom_call.1} parent=71 // pred_check
          %p635 = pneg %p202
        $region74: #{tpu_custom_call.1} parent=71 // pred_check_branch
          %637 = sbr.rel (%p635) target = $region76
        $region75: #{tpu_custom_call.1} parent=71 // pred_region
          %s638 = sand.u32 %s187, 1
          %s639 = scalar_lea.sflag [#allocation4], %s638
          %s640 = sand.u32 %s187, 1
          %s641 = smul.addr %s640, 8
          %s642 = scalar_lea.vmem [#allocation10], %s641
          %644 = dma.done %s639, 128
        $region76: #{tpu_custom_call.1} parent=71 // pred_fallthru
          _
      $region72: #{tpu_custom_call.1} parent=5 // pred_fallthru
        _
    $region6: #{tpu_custom_call.1} parent=1 // loop_footer
      %s25 = sadd.s32 1, %s21
    $region7: #{tpu_custom_call.1} parent=1 // loop_footer_branch
      %20 = sbr.rel target = $region3
    $region8: #{tpu_custom_call.1} parent=1 // loop_exit
      _
    %645 = vsyncpa [#allocation3], 1
    %s646 = scalar_lea.sflag [#allocation3], 1
    %647 = vsyncpa %s646, 1
    %648 = vsyncpa [#allocation6], 1
    %649 = vsyncpa [#allocation9], 1
    %650 = vsyncpa [#allocation4], 1
    %s651 = scalar_lea.sflag [#allocation4], 1
    %652 = vsyncpa %s651, 1

</llo_original>
